<compile_context>
chip_gen: v5e
topology: v5e:2x2
jax: 0.10.0
libtpu: 0.0.40
codegen_flags: <defaults>
</compile_context>

<pallas_src>
import jax
import jax.numpy as jnp
from jax.experimental import pallas as pl
from jax.experimental.pallas import tpu as pltpu


def _round_up(x, m):
    return ((x + m - 1) // m) * m


def _mlp_kernel(x_ref, w1_ref, w2_ref, b_ref, o_ref, acc_ref):
    k = pl.program_id(1)

    @pl.when(k == 0)
    def _():
        acc_ref[...] = jnp.zeros_like(acc_ref)

    # fc1 partial product: (tm, D) @ (D, th) -> (tm, th), f32 MXU accumulation.
    h = jnp.dot(x_ref[...], w1_ref[...], preferred_element_type=jnp.float32)
    # StarReLU with scale/bias folded into w2 / bias row outside the kernel.
    r = jnp.maximum(h, 0.0)
    a = r * r
    # fc2 partial product, accumulated over hidden-dim tiles in f32.
    acc_ref[...] += jnp.dot(
        a.astype(w2_ref.dtype), w2_ref[...], preferred_element_type=jnp.float32
    )

    @pl.when(k == pl.num_programs(1) - 1)
    def _():
        o_ref[...] = (acc_ref[...] + b_ref[...]).astype(o_ref.dtype)


def mlp_forward(x, w1, w2, scale, bias, *, tile_rows=512, hidden_tile=None):
    """Fused Mlp forward.

    x:     (..., D)   input, channels-last
    w1:    (D, H)     == fc1.weight.T  (torch Linear weight is (H, D))
    w2:    (H, Dout)  == fc2.weight.T
    scale: scalar / (1,)  StarReLU scale parameter
    bias:  scalar / (1,)  StarReLU bias parameter
    Dropout: module default drop=0.0 -> identity.
    For best MXU throughput pass x/w1/w2 as bf16 (f32 accumulation is kept).
    """
    # TODO(synk): train-mode dropout (drop > 0) is not implemented in-kernel;
    # the module default drop=0.0 makes drop1/drop2 identities.
    orig_shape = x.shape
    D = int(orig_shape[-1])
    assert w1.shape[0] == D
    H = int(w1.shape[1])
    assert w2.shape[0] == H
    Dout = int(w2.shape[1])

    rows = 1
    for s in orig_shape[:-1]:
        rows *= int(s)
    x2d = x.reshape(rows, D)

    # ---- Fold StarReLU scalars into fc2 (exact, since dropout p == 0):
    #   fc2(scale * r^2 + bias) = (r^2) @ (scale * w2) + bias * sum(w2, axis=0)
    scale_f = jnp.asarray(scale, jnp.float32).reshape(())
    bias_f = jnp.asarray(bias, jnp.float32).reshape(())
    w2f = w2.astype(jnp.float32)
    w2_scaled = (scale_f * w2f).astype(w2.dtype)
    b_row = (bias_f * jnp.sum(w2f, axis=0, keepdims=True)).astype(jnp.float32)  # (1, Dout)

    x_bytes = jnp.dtype(x.dtype).itemsize
    w_bytes = jnp.dtype(w1.dtype).itemsize
    sub = max(8, 32 // x_bytes)  # sublane multiple: f32 -> 8, bf16 -> 16, int8 -> 32

    # ---- Row tile: large (amortize per-step overhead) but guarantee >= 2 row
    # steps when possible so the "parallel" axis can occupy both TensorCores.
    tm = min(tile_rows, _round_up(rows, sub))
    if pl.cdiv(rows, tm) < 2 and rows > sub:
        tm = _round_up(pl.cdiv(rows, 2), sub)
    n_rows = pl.cdiv(rows, tm)

    # ---- Per-chip VMEM budget (v5e/v6e: 128 MiB, v7x: 64 MiB per TC), headroom left.
    try:
        vmem_cap = int(pltpu.get_tpu_info().vmem_capacity_bytes)
    except Exception:
        vmem_cap = 64 * 1024 * 1024
    vmem_budget = max(vmem_cap - 8 * 1024 * 1024, 16 * 1024 * 1024)

    # VMEM estimate: hidden-tile-independent part ...
    fixed = (2 * tm * D * x_bytes            # x row tile (double-buffered)
             + 2 * tm * Dout * x_bytes       # output tile (double-buffered)
             + tm * Dout * 4                 # f32 accumulator scratch
             + 8 * Dout * 4)                 # folded bias row (padded)
    # ... and bytes per unit of the hidden tile th.
    per_th = (2 * (D + Dout) * w_bytes       # w1 / w2 tiles (double-buffered)
              + 3 * tm * 4)                  # (tm, th) f32 intermediates (h, r*r, cast)

    if hidden_tile is not None:
        th = int(hidden_tile)
        assert th == H or (H % th == 0 and th % 128 == 0)
    else:
        th_cap = (vmem_budget - fixed) // max(per_th, 1)
        if H <= th_cap:
            th = H                            # weights fully resident, single k step
        else:
            th = 0
            c = (min(th_cap, H) // 128) * 128
            while c >= 128:
                if H % c == 0:                # must divide H exactly: padded k-blocks
                    th = c                    # would corrupt the reduction
                    break
                c -= 128
            if th == 0:
                th = H                        # no 128-aligned divisor: keep resident
    n_k = H // th if H % th == 0 else pl.cdiv(H, th)

    est = fixed + per_th * th + 2 * 1024 * 1024
    vmem_limit = int(min(vmem_budget, max(est, 16 * 1024 * 1024)))

    weights_const = (n_k == 1)

    def _spec(shape, index_map, single_buffer):
        # Single-buffer blocks whose index map is constant over the whole grid:
        # they are DMA'd exactly once, so a second buffer is wasted VMEM.
        if single_buffer and hasattr(pl, "Buffered"):
            try:
                return pl.BlockSpec(shape, index_map, pipeline_mode=pl.Buffered(1))
            except TypeError:
                pass
        return pl.BlockSpec(shape, index_map)

    def _run(use_single_buffer):
        in_specs = [
            pl.BlockSpec((tm, D), lambda i, k: (i, 0)),                         # x rows
            _spec((D, th), lambda i, k: (0, k), use_single_buffer and weights_const),
            _spec((th, Dout), lambda i, k: (k, 0), use_single_buffer and weights_const),
            _spec((1, Dout), lambda i, k: (0, 0), use_single_buffer),           # bias row
        ]
        out_specs = pl.BlockSpec((tm, Dout), lambda i, k: (i, 0))
        return pl.pallas_call(
            _mlp_kernel,
            out_shape=jax.ShapeDtypeStruct((rows, Dout), x.dtype),
            grid_spec=pltpu.PrefetchScalarGridSpec(
                num_scalar_prefetch=0,
                grid=(n_rows, n_k),
                in_specs=in_specs,
                out_specs=out_specs,
                scratch_shapes=[pltpu.VMEM((tm, Dout), jnp.float32)],
            ),
            compiler_params=pltpu.CompilerParams(
                dimension_semantics=("parallel", "arbitrary"),
                vmem_limit_bytes=vmem_limit,
            ),
        )(x2d, w1, w2_scaled, b_row)

    try:
        out = _run(True)
    except Exception:
        out = _run(False)  # fall back if pipeline_mode / pl.Buffered(1) is unsupported

    return out.reshape(orig_shape[:-1] + (Dout,))


def _mlp_reference(x, w1, w2, scale, bias):
    h = x @ w1
    a = jnp.asarray(scale).reshape(()) * jnp.maximum(h, 0.0) ** 2 + jnp.asarray(bias).reshape(())
    return a @ w2


if __name__ == "__main__":
    # ---- Test 1: Mlp(dim=32, mlp_ratio=4), x = (2, 8, 32), f32, resident-weights path.
    batch, seq, dim, ratio = 2, 8, 32, 4
    hidden = dim * ratio
    kx, k1, k2 = jax.random.split(jax.random.PRNGKey(0), 3)
    x = jax.random.normal(kx, (batch, seq, dim), dtype=jnp.float32)
    # fc1.weight is (hidden, dim) in torch; we pass its transpose (dim, hidden).
    w1 = jax.random.normal(k1, (dim, hidden), dtype=jnp.float32) * 0.05
    w2 = jax.random.normal(k2, (hidden, dim), dtype=jnp.float32) * 0.05
    scale = jnp.array([1.25], dtype=jnp.float32)
    bias = jnp.array([0.1], dtype=jnp.float32)

    y = jax.block_until_ready(mlp_forward(x, w1, w2, scale, bias))
    y_ref = _mlp_reference(x, w1, w2, scale, bias)
    assert y.shape == (batch, seq, dim)
    assert jnp.allclose(y, y_ref, atol=1e-4, rtol=1e-4), float(jnp.max(jnp.abs(y - y_ref)))

    # ---- Test 2: dim=64 with hidden_tile=128 -> exercises the H-blocked accumulator path.
    dim2, seq2 = 64, 16
    hidden2 = dim2 * ratio
    k3, k4, k5 = jax.random.split(jax.random.PRNGKey(1), 3)
    x2 = jax.random.normal(k3, (batch, seq2, dim2), dtype=jnp.float32)
    w1b = jax.random.normal(k4, (dim2, hidden2), dtype=jnp.float32) * 0.05
    w2b = jax.random.normal(k5, (hidden2, dim2), dtype=jnp.float32) * 0.05
    y2 = jax.block_until_ready(mlp_forward(x2, w1b, w2b, scale, bias, hidden_tile=128))
    y2_ref = _mlp_reference(x2, w1b, w2b, scale, bias)
    assert y2.shape == (batch, seq2, dim2)
    assert jnp.allclose(y2, y2_ref, atol=2e-4, rtol=2e-4), float(jnp.max(jnp.abs(y2 - y2_ref)))

    # ---- Test 3: bf16 operands (native MXU format) with f32 accumulation, loose tolerance.
    y3 = jax.block_until_ready(
        mlp_forward(x.astype(jnp.bfloat16), w1.astype(jnp.bfloat16),
                    w2.astype(jnp.bfloat16), scale, bias))
    assert y3.dtype == jnp.bfloat16 and y3.shape == (batch, seq, dim)
    assert jnp.allclose(y3.astype(jnp.float32), y_ref, atol=5e-2, rtol=5e-2)

    print("KERNEL_OK")
</pallas_src>

<mosaic_0001>
module attributes {stable_mosaic.version = 11 : i64} {
  func.func @_mlp_kernel(%arg0: i32, %arg1: i32, %arg2: memref<8x32xf32, #tpu.memory_space<vmem>>, %arg3: memref<32x128xf32, #tpu.memory_space<vmem>>, %arg4: memref<128x32xf32, #tpu.memory_space<vmem>>, %arg5: memref<1x32xf32, #tpu.memory_space<vmem>>, %arg6: memref<8x32xf32, #tpu.memory_space<vmem>>, %arg7: memref<8x32xf32, #tpu.memory_space<vmem>>) attributes {dimension_semantics = [#tpu.dimension_semantics<parallel>, #tpu.dimension_semantics<arbitrary>], iteration_bounds = array<i64: 2, 1>, scalar_prefetch = 0 : i64, scratch_operands = 1 : i64, tpu.core_type = #tpu.core_type<tc>, window_params = [{transform_indices = @transform_0, window_bounds = array<i64: 8, 32>}, {pipeline_mode = #tpu.pipeline_mode<synchronous>, transform_indices = @transform_1, window_bounds = array<i64: 32, 128>}, {pipeline_mode = #tpu.pipeline_mode<synchronous>, transform_indices = @transform_2, window_bounds = array<i64: 128, 32>}, {pipeline_mode = #tpu.pipeline_mode<synchronous>, transform_indices = @transform_3, window_bounds = array<i64: 1, 32>}, {transform_indices = @transform_4, window_bounds = array<i64: 8, 32>}]} {
    %c0_i32 = arith.constant 0 : i32
    %0 = arith.cmpi eq, %arg1, %c0_i32 : i32
    %1 = arith.extui %0 : i1 to i32
    %c0_i32_0 = arith.constant 0 : i32
    %2 = arith.cmpi ne, %1, %c0_i32_0 : i32
    scf.if %2 {
      %cst_14 = arith.constant 0.000000e+00 : f32
      %17 = vector.broadcast %cst_14 : f32 to vector<8x32xf32>
      %c0_15 = arith.constant 0 : index
      %c0_16 = arith.constant 0 : index
      %18 = vector.load %arg7[%c0_15, %c0_16] : memref<8x32xf32, #tpu.memory_space<vmem>>, vector<8x32xf32>
      tpu.vector_store %arg7[%c0_15, %c0_16], %17 {strides = array<i32>} : memref<8x32xf32, #tpu.memory_space<vmem>>, vector<8x32xf32>,
    } else {
    }
    %c0 = arith.constant 0 : index
    %c0_1 = arith.constant 0 : index
    %3 = vector.load %arg2[%c0, %c0_1] : memref<8x32xf32, #tpu.memory_space<vmem>>, vector<8x32xf32>
    %c0_2 = arith.constant 0 : index
    %c0_3 = arith.constant 0 : index
    %4 = vector.load %arg3[%c0_2, %c0_3] : memref<32x128xf32, #tpu.memory_space<vmem>>, vector<32x128xf32>
    %cst = arith.constant dense<0.000000e+00> : vector<8x128xf32>
    %5 = tpu.matmul %3, %4, %cst {dimension_numbers = #tpu.dot_dimension_numbers<[1], [0], [0], [1], [0, 0, 1, 1], [], []>} : vector<8x32xf32>, vector<32x128xf32>, vector<8x128xf32> -> vector<8x128xf32>
    %cst_4 = arith.constant 0.000000e+00 : f32
    %6 = vector.broadcast %cst_4 : f32 to vector<8x128xf32>
    %7 = arith.maximumf %5, %6 : vector<8x128xf32>
    %8 = arith.mulf %7, %7 : vector<8x128xf32>
    %c0_5 = arith.constant 0 : index
    %c0_6 = arith.constant 0 : index
    %9 = vector.load %arg7[%c0_5, %c0_6] : memref<8x32xf32, #tpu.memory_space<vmem>>, vector<8x32xf32>
    %c0_7 = arith.constant 0 : index
    %c0_8 = arith.constant 0 : index
    %10 = vector.load %arg4[%c0_7, %c0_8] : memref<128x32xf32, #tpu.memory_space<vmem>>, vector<128x32xf32>
    %cst_9 = arith.constant dense<0.000000e+00> : vector<8x32xf32>
    %11 = tpu.matmul %8, %10, %cst_9 {dimension_numbers = #tpu.dot_dimension_numbers<[1], [0], [0], [1], [0, 0, 1, 1], [], []>} : vector<8x128xf32>, vector<128x32xf32>, vector<8x32xf32> -> vector<8x32xf32>
    %12 = arith.addf %9, %11 : vector<8x32xf32>
    %c0_10 = arith.constant 0 : index
    %c0_11 = arith.constant 0 : index
    %13 = vector.load %arg7[%c0_10, %c0_11] : memref<8x32xf32, #tpu.memory_space<vmem>>, vector<8x32xf32>
    tpu.vector_store %arg7[%c0_10, %c0_11], %12 {strides = array<i32>} : memref<8x32xf32, #tpu.memory_space<vmem>>, vector<8x32xf32>,
    %c0_i32_12 = arith.constant 0 : i32
    %14 = arith.cmpi eq, %arg1, %c0_i32_12 : i32
    %15 = arith.extui %14 : i1 to i32
    %c0_i32_13 = arith.constant 0 : i32
    %16 = arith.cmpi ne, %15, %c0_i32_13 : i32
    scf.if %16 {
      %c0_14 = arith.constant 0 : index
      %c0_15 = arith.constant 0 : index
      %17 = vector.load %arg7[%c0_14, %c0_15] : memref<8x32xf32, #tpu.memory_space<vmem>>, vector<8x32xf32>
      %c0_16 = arith.constant 0 : index
      %c0_17 = arith.constant 0 : index
      %18 = vector.load %arg5[%c0_16, %c0_17] : memref<1x32xf32, #tpu.memory_space<vmem>>, vector<1x32xf32>
      %19 = vector.broadcast %18 : vector<1x32xf32> to vector<8x32xf32>
      %20 = arith.addf %17, %19 : vector<8x32xf32>
      %c0_18 = arith.constant 0 : index
      %c0_19 = arith.constant 0 : index
      %21 = vector.load %arg6[%c0_18, %c0_19] : memref<8x32xf32, #tpu.memory_space<vmem>>, vector<8x32xf32>
      tpu.vector_store %arg6[%c0_18, %c0_19], %20 {strides = array<i32>} : memref<8x32xf32, #tpu.memory_space<vmem>>, vector<8x32xf32>,
    } else {
    }
    return
  }
  func.func @transform_0(%arg0: i32, %arg1: i32) -> (i32, i32) {
    %c0_i32 = arith.constant 0 : i32
    %c0_i32_0 = arith.constant 0 : i32
    return %arg0, %c0_i32 : i32, i32
  }
  func.func @transform_1(%arg0: i32, %arg1: i32) -> (i32, i32) {
    %c0_i32 = arith.constant 0 : i32
    %c0_i32_0 = arith.constant 0 : i32
    return %c0_i32, %arg1 : i32, i32
  }
  func.func @transform_2(%arg0: i32, %arg1: i32) -> (i32, i32) {
    %c0_i32 = arith.constant 0 : i32
    %c0_i32_0 = arith.constant 0 : i32
    return %arg1, %c0_i32 : i32, i32
  }
  func.func @transform_3(%arg0: i32, %arg1: i32) -> (i32, i32) {
    %c0_i32 = arith.constant 0 : i32
    %c0_i32_0 = arith.constant 0 : i32
    %c0_i32_1 = arith.constant 0 : i32
    return %c0_i32, %c0_i32_0 : i32, i32
  }
  func.func @transform_4(%arg0: i32, %arg1: i32) -> (i32, i32) {
    %c0_i32 = arith.constant 0 : i32
    %c0_i32_0 = arith.constant 0 : i32
    return %arg0, %c0_i32 : i32, i32
  }
}

module attributes {stable_mosaic.version = 11 : i64} {
  func.func @_mlp_kernel(%arg0: i32, %arg1: i32, %arg2: memref<8x32xf32, #tpu.memory_space<vmem>>, %arg3: memref<32x128xf32, #tpu.memory_space<vmem>>, %arg4: memref<128x32xf32, #tpu.memory_space<vmem>>, %arg5: memref<1x32xf32, #tpu.memory_space<vmem>>, %arg6: memref<8x32xf32, #tpu.memory_space<vmem>>, %arg7: memref<8x32xf32, #tpu.memory_space<vmem>>) attributes {dimension_semantics = [#tpu.dimension_semantics<parallel>, #tpu.dimension_semantics<arbitrary>], iteration_bounds = array<i64: 2, 1>, scalar_prefetch = 0 : i64, scratch_operands = 1 : i64, tpu.core_type = #tpu.core_type<tc>, window_params = [{transform_indices = @transform_0, window_bounds = array<i64: 8, 32>}, {transform_indices = @transform_1, window_bounds = array<i64: 32, 128>}, {transform_indices = @transform_2, window_bounds = array<i64: 128, 32>}, {pipeline_mode = #tpu.pipeline_mode<synchronous>, transform_indices = @transform_3, window_bounds = array<i64: 1, 32>}, {transform_indices = @transform_4, window_bounds = array<i64: 8, 32>}]} {
    %c0_i32 = arith.constant 0 : i32
    %0 = arith.cmpi eq, %arg1, %c0_i32 : i32
    %1 = arith.extui %0 : i1 to i32
    %c0_i32_0 = arith.constant 0 : i32
    %2 = arith.cmpi ne, %1, %c0_i32_0 : i32
    scf.if %2 {
      %cst_14 = arith.constant 0.000000e+00 : f32
      %17 = vector.broadcast %cst_14 : f32 to vector<8x32xf32>
      %c0_15 = arith.constant 0 : index
      %c0_16 = arith.constant 0 : index
      %18 = vector.load %arg7[%c0_15, %c0_16] : memref<8x32xf32, #tpu.memory_space<vmem>>, vector<8x32xf32>
      tpu.vector_store %arg7[%c0_15, %c0_16], %17 {strides = array<i32>} : memref<8x32xf32, #tpu.memory_space<vmem>>, vector<8x32xf32>,
    } else {
    }
    %c0 = arith.constant 0 : index
    %c0_1 = arith.constant 0 : index
    %3 = vector.load %arg2[%c0, %c0_1] : memref<8x32xf32, #tpu.memory_space<vmem>>, vector<8x32xf32>
    %c0_2 = arith.constant 0 : index
    %c0_3 = arith.constant 0 : index
    %4 = vector.load %arg3[%c0_2, %c0_3] : memref<32x128xf32, #tpu.memory_space<vmem>>, vector<32x128xf32>
    %cst = arith.constant dense<0.000000e+00> : vector<8x128xf32>
    %5 = tpu.matmul %3, %4, %cst {dimension_numbers = #tpu.dot_dimension_numbers<[1], [0], [0], [1], [0, 0, 1, 1], [], []>} : vector<8x32xf32>, vector<32x128xf32>, vector<8x128xf32> -> vector<8x128xf32>
    %cst_4 = arith.constant 0.000000e+00 : f32
    %6 = vector.broadcast %cst_4 : f32 to vector<8x128xf32>
    %7 = arith.maximumf %5, %6 : vector<8x128xf32>
    %8 = arith.mulf %7, %7 : vector<8x128xf32>
    %c0_5 = arith.constant 0 : index
    %c0_6 = arith.constant 0 : index
    %9 = vector.load %arg7[%c0_5, %c0_6] : memref<8x32xf32, #tpu.memory_space<vmem>>, vector<8x32xf32>
    %c0_7 = arith.constant 0 : index
    %c0_8 = arith.constant 0 : index
    %10 = vector.load %arg4[%c0_7, %c0_8] : memref<128x32xf32, #tpu.memory_space<vmem>>, vector<128x32xf32>
    %cst_9 = arith.constant dense<0.000000e+00> : vector<8x32xf32>
    %11 = tpu.matmul %8, %10, %cst_9 {dimension_numbers = #tpu.dot_dimension_numbers<[1], [0], [0], [1], [0, 0, 1, 1], [], []>} : vector<8x128xf32>, vector<128x32xf32>, vector<8x32xf32> -> vector<8x32xf32>
    %12 = arith.addf %9, %11 : vector<8x32xf32>
    %c0_10 = arith.constant 0 : index
    %c0_11 = arith.constant 0 : index
    %13 = vector.load %arg7[%c0_10, %c0_11] : memref<8x32xf32, #tpu.memory_space<vmem>>, vector<8x32xf32>
    tpu.vector_store %arg7[%c0_10, %c0_11], %12 {strides = array<i32>} : memref<8x32xf32, #tpu.memory_space<vmem>>, vector<8x32xf32>,
    %c0_i32_12 = arith.constant 0 : i32
    %14 = arith.cmpi eq, %arg1, %c0_i32_12 : i32
    %15 = arith.extui %14 : i1 to i32
    %c0_i32_13 = arith.constant 0 : i32
    %16 = arith.cmpi ne, %15, %c0_i32_13 : i32
    scf.if %16 {
      %c0_14 = arith.constant 0 : index
      %c0_15 = arith.constant 0 : index
      %17 = vector.load %arg7[%c0_14, %c0_15] : memref<8x32xf32, #tpu.memory_space<vmem>>, vector<8x32xf32>
      %c0_16 = arith.constant 0 : index
      %c0_17 = arith.constant 0 : index
      %18 = vector.load %arg5[%c0_16, %c0_17] : memref<1x32xf32, #tpu.memory_space<vmem>>, vector<1x32xf32>
      %19 = vector.broadcast %18 : vector<1x32xf32> to vector<8x32xf32>
      %20 = arith.addf %17, %19 : vector<8x32xf32>
      %c0_18 = arith.constant 0 : index
      %c0_19 = arith.constant 0 : index
      %21 = vector.load %arg6[%c0_18, %c0_19] : memref<8x32xf32, #tpu.memory_space<vmem>>, vector<8x32xf32>
      tpu.vector_store %arg6[%c0_18, %c0_19], %20 {strides = array<i32>} : memref<8x32xf32, #tpu.memory_space<vmem>>, vector<8x32xf32>,
    } else {
    }
    return
  }
  func.func @transform_0(%arg0: i32, %arg1: i32) -> (i32, i32) {
    %c0_i32 = arith.constant 0 : i32
    %c0_i32_0 = arith.constant 0 : i32
    return %arg0, %c0_i32 : i32, i32
  }
  func.func @transform_1(%arg0: i32, %arg1: i32) -> (i32, i32) {
    %c0_i32 = arith.constant 0 : i32
    %c0_i32_0 = arith.constant 0 : i32
    return %c0_i32, %arg1 : i32, i32
  }
  func.func @transform_2(%arg0: i32, %arg1: i32) -> (i32, i32) {
    %c0_i32 = arith.constant 0 : i32
    %c0_i32_0 = arith.constant 0 : i32
    return %arg1, %c0_i32 : i32, i32
  }
  func.func @transform_3(%arg0: i32, %arg1: i32) -> (i32, i32) {
    %c0_i32 = arith.constant 0 : i32
    %c0_i32_0 = arith.constant 0 : i32
    %c0_i32_1 = arith.constant 0 : i32
    return %c0_i32, %c0_i32_0 : i32, i32
  }
  func.func @transform_4(%arg0: i32, %arg1: i32) -> (i32, i32) {
    %c0_i32 = arith.constant 0 : i32
    %c0_i32_0 = arith.constant 0 : i32
    return %arg0, %c0_i32 : i32, i32
  }
}

</mosaic_0001>

<llo_original>
// kernel: tpu_custom_call.1
$region0: #{tpu_custom_call.1}
  #allocation0 [shape = 'u32[]', space=smem, size = 0x4, offset = 0x4, fixed_abs, tag = 'smem constant byte address 0x4 - core index']
  #allocation1 [shape = 'u32[72,128]{1,0:T(1,128)}', space=vmem, size = 0x9000, scoped, tag = 'internal scratch']
  #allocation2 [shape = 'f32[8,32]{1,0:T(8,128)}', space=vmem, size = 0x1000, scoped, tag = 'scratch operand']
  %s0 = inlined_call_operand.vmem [shape: f32[16,32], index: 0, kind: input, shape index: {}]
  %s1 = inlined_call_operand.vmem [shape: f32[32,128], index: 1, kind: input, shape index: {}]
  %s2 = inlined_call_operand.vmem [shape: f32[128,32], index: 2, kind: input, shape index: {}]
  %s3 = inlined_call_operand.vmem [shape: f32[1,32], index: 3, kind: input, shape index: {}]
  %s4 = inlined_call_operand.hbm [shape: f32[16,32], index: 4, kind: output, shape index: {}]
  %s5 = sld [smem:[#allocation0]]
  $region57: #{tpu_custom_call.1} parent=0
    _
  %s7 = ssub.s32 1, %s5
  %s8 = scalar_select 0, %s7, %s5
  $region1: #{tpu_custom_call.1} parent=0
    #allocation3 [shape = 'u8[8192]{0}', space=vmem, size = 0x2000, scoped, tag = 'output window, operand 0']
    #allocation4 [shape = 's32[2]{0}', space=sflag, size = 0x8, scoped, tag = 'scoped memory for tpu_custom_call.1']
    %9 = vsyncpa [#allocation4], 0
    %s10 = scalar_lea.sflag [#allocation4], 1
    %11 = vsyncpa %s10, 0
    loop: start=0, step=1, limit=4
    $region2: #{tpu_custom_call.1} parent=1 // loop_pre_header
      _
    $region3: #{tpu_custom_call.1} parent=1 // loop_header
      %s13 = sphi 0, %s17
      %p14 = scmp.ge.s32.totalorder %s13, 4
      %s20 = sphi 0, %s32
      %s21 = sphi 0, %s28
      %s22 = sphi 0, %s20
      %s23 = sphi 0, %s21
      %s24 = sphi 0, %s22
      %s25 = sphi 0, %s23
      %s35 = sphi 0, %s37
      %s38 = sphi 0, %s35
      %s39 = sphi 0, %s38
      %s55 = sphi 0, %s39
      %s61 = sphi 0, %s63
      %s64 = sphi 0, %s61
      %s65 = sphi 0, %s64
      %s81 = sphi 0, %s65
      %s87 = sphi 0, %s89
      %s90 = sphi 0, %s87
      %s91 = sphi 0, %s90
      %s107 = sphi 0, %s91
      %s111 = sphi 0, %s111
      %s113 = sphi 0, %s111
      %s114 = sphi 0, %s113
      %s128 = sphi 0, %s114
      %s134 = sphi 0, %s136
      %s137 = sphi 0, %s134
      %s138 = sphi 0, %s137
      %s154 = sphi 0, %s138
    $region4: #{tpu_custom_call.1} parent=1 // loop_header_branch
      %16 = sbr.rel (%p14) target = $region8
    $region5: #{tpu_custom_call.1} parent=1 // loop_body
      %s18 = ssub.s32 %s13, 1
      %s19 = ssub.s32 %s13, 2
      %s26 = sadd.s32 1, %s21
      %p27 = scmp.ge.s32.totalorder %s26, 1
      %s28 = scalar_select %p27, 0, %s26
      %s29 = sadd.s32 1, %s20
      %s30 = scalar_select %p27, %s29, %s20
      %p31 = scmp.ge.s32.totalorder %s30, 2
      %s32 = scalar_select %p31, 0, %s30
      %s33 = ssub.s32 %s20, %s32
      %p34 = scmp.eq.s32.totalorder %s33, 0
      %s36 = sadd.s32 %s35, 1
      %s37 = scalar_select %p34, %s35, %s36
      %p40 = pneg %p34
      %p41 = scmp.eq.s32.totalorder %s13, 1
      %p42 = por %p40, %p41
      %p43 = scmp.ne.s32.totalorder %s35, %s38
      %p44 = scmp.eq.s32.totalorder %s13, 0
      %p45 = por %p43, %p44
      %p46 = scmp.ne.s32.totalorder %s35, %s38
      %p47 = scmp.eq.s32.totalorder %s18, 1
      %p48 = por %p46, %p47
      %p49 = scmp.ne.s32.totalorder %s38, %s39
      %p50 = scmp.eq.s32.totalorder %s18, 0
      %p51 = por %p49, %p50
      %p52 = scmp.ne.s32.totalorder %s38, %s39
      %p53 = scmp.eq.s32.totalorder %s19, 1
      %p54 = por %p52, %p53
      %p56 = scmp.ne.s32.totalorder %s39, %s55
      %p57 = scmp.eq.s32.totalorder %s19, 0
      %p58 = por %p56, %p57
      %s59 = ssub.s32 %s21, %s28
      %p60 = scmp.eq.s32.totalorder %s59, 0
      %s62 = sadd.s32 %s61, 1
      %s63 = scalar_select %p60, %s61, %s62
      %p66 = pneg %p60
      %p67 = scmp.eq.s32.totalorder %s13, 1
      %p68 = por %p66, %p67
      %p69 = scmp.ne.s32.totalorder %s61, %s64
      %p70 = scmp.eq.s32.totalorder %s13, 0
      %p71 = por %p69, %p70
      %p72 = scmp.ne.s32.totalorder %s61, %s64
      %p73 = scmp.eq.s32.totalorder %s18, 1
      %p74 = por %p72, %p73
      %p75 = scmp.ne.s32.totalorder %s64, %s65
      %p76 = scmp.eq.s32.totalorder %s18, 0
      %p77 = por %p75, %p76
      %p78 = scmp.ne.s32.totalorder %s64, %s65
      %p79 = scmp.eq.s32.totalorder %s19, 1
      %p80 = por %p78, %p79
      %p82 = scmp.ne.s32.totalorder %s65, %s81
      %p83 = scmp.eq.s32.totalorder %s19, 0
      %p84 = por %p82, %p83
      %s85 = ssub.s32 %s21, %s28
      %p86 = scmp.eq.s32.totalorder %s85, 0
      %s88 = sadd.s32 %s87, 1
      %s89 = scalar_select %p86, %s87, %s88
      %p92 = pneg %p86
      %p93 = scmp.eq.s32.totalorder %s13, 1
      %p94 = por %p92, %p93
      %p95 = scmp.ne.s32.totalorder %s87, %s90
      %p96 = scmp.eq.s32.totalorder %s13, 0
      %p97 = por %p95, %p96
      %p98 = scmp.ne.s32.totalorder %s87, %s90
      %p99 = scmp.eq.s32.totalorder %s18, 1
      %p100 = por %p98, %p99
      %p101 = scmp.ne.s32.totalorder %s90, %s91
      %p102 = scmp.eq.s32.totalorder %s18, 0
      %p103 = por %p101, %p102
      %p104 = scmp.ne.s32.totalorder %s90, %s91
      %p105 = scmp.eq.s32.totalorder %s19, 1
      %p106 = por %p104, %p105
      %p108 = scmp.ne.s32.totalorder %s91, %s107
      %p109 = scmp.eq.s32.totalorder %s19, 0
      %p110 = por %p108, %p109
      %s112 = sadd.s32 %s111, 1
      %p115 = scmp.eq.s32.totalorder %s13, 1
      %p116 = scmp.ne.s32.totalorder %s111, %s113
      %p117 = scmp.eq.s32.totalorder %s13, 0
      %p118 = por %p116, %p117
      %p119 = scmp.ne.s32.totalorder %s111, %s113
      %p120 = scmp.eq.s32.totalorder %s18, 1
      %p121 = por %p119, %p120
      %p122 = scmp.ne.s32.totalorder %s113, %s114
      %p123 = scmp.eq.s32.totalorder %s18, 0
      %p124 = por %p122, %p123
      %p125 = scmp.ne.s32.totalorder %s113, %s114
      %p126 = scmp.eq.s32.totalorder %s19, 1
      %p127 = por %p125, %p126
      %p129 = scmp.ne.s32.totalorder %s114, %s128
      %p130 = scmp.eq.s32.totalorder %s19, 0
      %p131 = por %p129, %p130
      %s132 = ssub.s32 %s20, %s32
      %p133 = scmp.eq.s32.totalorder %s132, 0
      %s135 = sadd.s32 %s134, 1
      %s136 = scalar_select %p133, %s134, %s135
      %p139 = pneg %p133
      %p140 = scmp.eq.s32.totalorder %s13, 1
      %p141 = por %p139, %p140
      %p142 = scmp.ne.s32.totalorder %s134, %s137
      %p143 = scmp.eq.s32.totalorder %s13, 0
      %p144 = por %p142, %p143
      %p145 = scmp.ne.s32.totalorder %s134, %s137
      %p146 = scmp.eq.s32.totalorder %s18, 1
      %p147 = por %p145, %p146
      %p148 = scmp.ne.s32.totalorder %s137, %s138
      %p149 = scmp.eq.s32.totalorder %s18, 0
      %p150 = por %p148, %p149
      %p151 = scmp.ne.s32.totalorder %s137, %s138
      %p152 = scmp.eq.s32.totalorder %s19, 1
      %p153 = por %p151, %p152
      %p155 = scmp.ne.s32.totalorder %s138, %s154
      %p156 = scmp.eq.s32.totalorder %s19, 0
      %p157 = por %p155, %p156
      %p158 = scmp.le.s32.totalorder 1, %s13
      %p159 = scmp.lt.s32.totalorder %s13, 3
      %p160 = pnand %p158, %p159
      %p161 = pneg %p160
      // Predicated region
      $region9: #{tpu_custom_call.1} parent=5 // pred_check
        _
      $region10: #{tpu_custom_call.1} parent=5 // pred_check_branch
        %163 = sbr.rel (%p160) target = $region12
      $region11: #{tpu_custom_call.1} parent=5 // pred_region
        %s164 = ssub.s32 %s13, 1
        // Predicated region
        $region13: #{tpu_custom_call.1} parent=11 // pred_check
          %p165 = pneg %p77
        $region14: #{tpu_custom_call.1} parent=11 // pred_check_branch
          %167 = sbr.rel (%p165) target = $region16
        $region15: #{tpu_custom_call.1} parent=11 // pred_region
          %p168 = scmp.lt.s32.totalorder %s23, 0
          %s169 = scalar_select %p168, %s23, 0
          %s170 = smul.addr %s169, 8
          %s171 = scalar_lea.vmem %s1, %s170
        $region16: #{tpu_custom_call.1} parent=11 // pred_fallthru
          _
        // Predicated region
        $region17: #{tpu_custom_call.1} parent=11 // pred_check
          %p172 = pneg %p103
        $region18: #{tpu_custom_call.1} parent=11 // pred_check_branch
          %174 = sbr.rel (%p172) target = $region20
        $region19: #{tpu_custom_call.1} parent=11 // pred_region
          %s175 = smul.u32 16, %s23
          %p176 = scmp.lt.s32.totalorder %s175, 15
          %s177 = scalar_select %p176, %s175, 15
          %s178 = smul.addr %s177, 8
          %s179 = scalar_lea.vmem %s2, %s178
          %s180 = smul.u32 16, %s23
        $region20: #{tpu_custom_call.1} parent=11 // pred_fallthru
          _
        // Predicated region
        $region21: #{tpu_custom_call.1} parent=11 // pred_check
          %p181 = pneg %p124
        $region22: #{tpu_custom_call.1} parent=11 // pred_check_branch
          %183 = sbr.rel (%p181) target = $region24
        $region23: #{tpu_custom_call.1} parent=11 // pred_region
          _
        $region24: #{tpu_custom_call.1} parent=11 // pred_fallthru
          _
      $region12: #{tpu_custom_call.1} parent=5 // pred_fallthru
        _
      %p184 = scmp.lt.s32.totalorder %s13, 2
      // Predicated region
      $region25: #{tpu_custom_call.1} parent=5 // pred_check
        %p185 = pneg %p184
      $region26: #{tpu_custom_call.1} parent=5 // pred_check_branch
        %187 = sbr.rel (%p185) target = $region28
      $region27: #{tpu_custom_call.1} parent=5 // pred_region
        // Predicated region
        $region29: #{tpu_custom_call.1} parent=27 // pred_check
          %p188 = pneg %p45
        $region30: #{tpu_custom_call.1} parent=27 // pred_check_branch
          %190 = sbr.rel (%p188) target = $region32
        $region31: #{tpu_custom_call.1} parent=27 // pred_region
          %p191 = scmp.lt.s32.totalorder %s20, 1
          %s192 = scalar_select %p191, %s20, 1
          %s193 = smul.addr %s192, 8
          %s194 = scalar_lea.vmem %s0, %s193
        $region32: #{tpu_custom_call.1} parent=27 // pred_fallthru
          _
      $region28: #{tpu_custom_call.1} parent=5 // pred_fallthru
        _
      %p195 = scmp.le.s32.totalorder 1, %s13
      %p196 = scmp.lt.s32.totalorder %s13, 3
      %p197 = pnand %p195, %p196
      %p198 = pneg %p197
      // Predicated region
      $region33: #{tpu_custom_call.1} parent=5 // pred_check
        _
      $region34: #{tpu_custom_call.1} parent=5 // pred_check_branch
        %200 = sbr.rel (%p197) target = $region36
      $region35: #{tpu_custom_call.1} parent=5 // pred_region
        %s201 = ssub.s32 %s13, 1
        %p202 = scmp.lt.s32.totalorder %s22, 1
        %s203 = scalar_select %p202, %s22, 1
        %s204 = smul.addr %s203, 8
        %s205 = scalar_lea.vmem %s0, %s204
        %p206 = pneg %p51
        %p207 = pneg %p48
        %p208 = scmp.lt.s32.totalorder %s23, 0
        %s209 = scalar_select %p208, %s23, 0
        %s210 = smul.addr %s209, 8
        %s211 = scalar_lea.vmem %s1, %s210
        %p212 = pneg %p77
        %p213 = pneg %p74
        %s214 = smul.u32 16, %s23
        %p215 = scmp.lt.s32.totalorder %s214, 15
        %s216 = scalar_select %p215, %s214, 15
        %s217 = smul.addr %s216, 8
        %s218 = scalar_lea.vmem %s2, %s217
        %p219 = pneg %p103
        %p220 = pneg %p100
        %p221 = pneg %p124
        %p222 = pneg %p121
        %p223 = pneg %p150
        %p224 = pneg %p147
        %s225 = sand.u32 %s137, 1
        %s226 = scalar_lea.sflag [#allocation4], %s225
        %s227 = sand.u32 %s137, 1
        %s228 = smul.addr %s227, 8
        %s229 = scalar_lea.vmem [#allocation3], %s228
        %p230 = scmp.lt.s32.totalorder %s22, 1
        %s231 = scalar_select %p230, %s22, 1
        %s232 = smul.addr %s231, 8
        %s233 = scalar_lea.vmem %s0, %s232
        %p234 = scmp.lt.s32.totalorder %s23, 0
        %s235 = scalar_select %p234, %s23, 0
        %s236 = smul.addr %s235, 8
        %s237 = scalar_lea.vmem %s1, %s236
        %s238 = smul.u32 16, %s23
        %p239 = scmp.lt.s32.totalorder %s238, 15
        %s240 = scalar_select %p239, %s238, 15
        %s241 = smul.addr %s240, 8
        %s242 = scalar_lea.vmem %s2, %s241
        %s243 = smul.u32 16, %s23
        %p244 = scmp.eq.s32.totalorder %s23, 0
        // Predicated region
        $region37: #{tpu_custom_call.1} parent=35 // pred_check
          %p245 = pneg %p244
        $region38: #{tpu_custom_call.1} parent=35 // pred_check_branch
          %247 = sbr.rel (%p245) target = $region40
        $region39: #{tpu_custom_call.1} parent=35 // pred_region
          %vm248 = vcmask 261120
          %249 = vst.msk [vmem:[#allocation2] sm:$0xff] %vm248, 0.0
        $region40: #{tpu_custom_call.1} parent=35 // pred_fallthru
          _
        %v250 = vld [vmem:[%s233] sm:$0xff]
        %v251 = vld [vmem:[%s237] sm:$0xff]
        %v252 = vld [vmem:[%s237 + $0x8] sm:$0xff]
        %v253 = vld [vmem:[%s237 + $0x10] sm:$0xff]
        %v254 = vld [vmem:[%s237 + $0x18] sm:$0xff]
        %vm255 = vcmask 261120
        %v257 = vsel %vm255, %v250, 0
        %259 = vmatpush.msra.mxu0 0.0
        %260 = vmatpush.msra.mxu0 0.0
        %261 = vmatpush.msra.mxu0 0.0
        %262 = vmatpush.msra.mxu0 0.0
        %263 = vmatpush.msra.mxu0 0.0
        %264 = vmatpush.msra.mxu0 0.0
        %265 = vmatpush.msra.mxu0 0.0
        %266 = vmatpush.msra.mxu0 0.0
        %267 = vmatpush.msra.mxu0 0.0
        %268 = vmatpush.msra.mxu0 0.0
        %269 = vmatpush.msra.mxu0 0.0
        %270 = vmatpush.msra.mxu0 0.0
        %271 = vmatpush.msra.mxu0 %v254
        %272 = vmatpush.msra.mxu0 %v253
        %273 = vmatpush.msra.mxu0 %v252
        %274 = vmatpush.msra.mxu0 %v251
        %275 = vmatmul.f32.gmra.mxu0 %v257
        %v276 = vpop.f32.mrf.mxu0
        %v277 = vadd.f32 0.0, %v276
        %278 = vdwg.mxu0
        %v279 = vmax.f32 %v277, 0.0
        %v280 = vmul.f32 %v279, %v279
        %v281 = vld [vmem:[#allocation2] sm:$0xff]
        %v282 = vld [vmem:[%s242] sm:$0xff]
        %v283 = vld [vmem:[%s242 + $0x8] sm:$0xff]
        %v284 = vld [vmem:[%s242 + $0x10] sm:$0xff]
        %v285 = vld [vmem:[%s242 + $0x18] sm:$0xff]
        %v286 = vld [vmem:[%s242 + $0x20] sm:$0xff]
        %v287 = vld [vmem:[%s242 + $0x28] sm:$0xff]
        %v288 = vld [vmem:[%s242 + $0x30] sm:$0xff]
        %v289 = vld [vmem:[%s242 + $0x38] sm:$0xff]
        %v290 = vld [vmem:[%s242 + $0x40] sm:$0xff]
        %v291 = vld [vmem:[%s242 + $0x48] sm:$0xff]
        %v292 = vld [vmem:[%s242 + $0x50] sm:$0xff]
        %v293 = vld [vmem:[%s242 + $0x58] sm:$0xff]
        %v294 = vld [vmem:[%s242 + $0x60] sm:$0xff]
        %v295 = vld [vmem:[%s242 + $0x68] sm:$0xff]
        %v296 = vld [vmem:[%s242 + $0x70] sm:$0xff]
        %v297 = vld [vmem:[%s242 + $0x78] sm:$0xff]
        %298 = vmatpush.msra.mxu0 %v297
        %299 = vmatpush.msra.mxu0 %v296
        %300 = vmatpush.msra.mxu0 %v295
        %301 = vmatpush.msra.mxu0 %v294
        %302 = vmatpush.msra.mxu0 %v293
        %303 = vmatpush.msra.mxu0 %v292
        %304 = vmatpush.msra.mxu0 %v291
        %305 = vmatpush.msra.mxu0 %v290
        %306 = vmatpush.msra.mxu0 %v289
        %307 = vmatpush.msra.mxu0 %v288
        %308 = vmatpush.msra.mxu0 %v287
        %309 = vmatpush.msra.mxu0 %v286
        %310 = vmatpush.msra.mxu0 %v285
        %311 = vmatpush.msra.mxu0 %v284
        %312 = vmatpush.msra.mxu0 %v283
        %313 = vmatpush.msra.mxu0 %v282
        %314 = vmatmul.f32.gmra.mxu0 %v280
        %v315 = vpop.f32.mrf.mxu0
        %v316 = vadd.f32 0.0, %v315
        %317 = vdwg.mxu0
        %v318 = vadd.f32 %v281, %v316
        %319 = vst.msk [vmem:[#allocation2] sm:$0xff] %vm255, %v318
        // Predicated region
        $region41: #{tpu_custom_call.1} parent=35 // pred_check
          %p320 = pneg %p244
        $region42: #{tpu_custom_call.1} parent=35 // pred_check_branch
          %322 = sbr.rel (%p320) target = $region44
        $region43: #{tpu_custom_call.1} parent=35 // pred_region
          %v323 = vld [vmem:[#allocation2] sm:$0xff]
          %v324 = vld [vmem:[%s3] sm:$0x1]
          %v326 = vperm.slane %v324, 0
          %v328 = vadd.f32 %v323, %v326
          %329 = vst.msk [vmem:[%s229] sm:$0xff] %vm255, %v328
        $region44: #{tpu_custom_call.1} parent=35 // pred_fallthru
          _
        %s330 = sand.u32 %s137, 1
        %s331 = scalar_lea.sflag [#allocation4], %s330
        %s332 = sand.u32 %s137, 1
        %s333 = smul.addr %s332, 8
        %s334 = scalar_lea.vmem [#allocation3], %s333
        // Predicated region
        $region45: #{tpu_custom_call.1} parent=35 // pred_check
          %p335 = pneg %p147
        $region46: #{tpu_custom_call.1} parent=35 // pred_check_branch
          %337 = sbr.rel (%p335) target = $region48
        $region47: #{tpu_custom_call.1} parent=35 // pred_region
          %339 = vsyncadd %s331, 0
          %s340 = smul.addr %s22, 8
          %s341 = scalar_lea.hbm %s4, %s340
          %s343 = sshll.u32 %s334, 4
          %s344 = int_to_ptr.vmem [resolvable:$true] %s343
          %s345 = sshll.u32 %s341, 4
          %s346 = int_to_ptr.hbm [resolvable:$true] %s345
          %348 = dma.vmem_to_hbm [thread:$0]  %s344, 128, %s346, %s331
        $region48: #{tpu_custom_call.1} parent=35 // pred_fallthru
          _
      $region36: #{tpu_custom_call.1} parent=5 // pred_fallthru
        _
      %p349 = scmp.le.s32.totalorder 2, %s13
      // Predicated region
      $region49: #{tpu_custom_call.1} parent=5 // pred_check
        %p350 = pneg %p349
      $region50: #{tpu_custom_call.1} parent=5 // pred_check_branch
        %352 = sbr.rel (%p350) target = $region52
      $region51: #{tpu_custom_call.1} parent=5 // pred_region
        %s353 = ssub.s32 %s13, 2
        // Predicated region
        $region53: #{tpu_custom_call.1} parent=51 // pred_check
          %p354 = pneg %p153
        $region54: #{tpu_custom_call.1} parent=51 // pred_check_branch
          %356 = sbr.rel (%p354) target = $region56
        $region55: #{tpu_custom_call.1} parent=51 // pred_region
          %s357 = sand.u32 %s138, 1
          %s358 = scalar_lea.sflag [#allocation4], %s357
          %s359 = sand.u32 %s138, 1
          %s360 = smul.addr %s359, 8
          %s361 = scalar_lea.vmem [#allocation3], %s360
          %363 = dma.done %s358, 128
        $region56: #{tpu_custom_call.1} parent=51 // pred_fallthru
          _
      $region52: #{tpu_custom_call.1} parent=5 // pred_fallthru
        _
    $region6: #{tpu_custom_call.1} parent=1 // loop_footer
      %s17 = sadd.s32 1, %s13
    $region7: #{tpu_custom_call.1} parent=1 // loop_footer_branch
      %12 = sbr.rel target = $region3
    $region8: #{tpu_custom_call.1} parent=1 // loop_exit
      _
    %364 = vsyncpa [#allocation4], 1
    %s365 = scalar_lea.sflag [#allocation4], 1
    %366 = vsyncpa %s365, 1

// kernel: tpu_custom_call.1
$region0: #{tpu_custom_call.1}
  #allocation0 [shape = 'u32[]', space=smem, size = 0x4, offset = 0x4, fixed_abs, tag = 'smem constant byte address 0x4 - core index']
  #allocation1 [shape = 'u32[72,128]{1,0:T(1,128)}', space=vmem, size = 0x9000, scoped, tag = 'internal scratch']
  #allocation2 [shape = 'f32[8,32]{1,0:T(8,128)}', space=vmem, size = 0x1000, scoped, tag = 'scratch operand']
  %s0 = inlined_call_operand.vmem [shape: f32[16,32], index: 0, kind: input, shape index: {}]
  %s1 = inlined_call_operand.vmem [shape: f32[32,128], index: 1, kind: input, shape index: {}]
  %s2 = inlined_call_operand.vmem [shape: f32[128,32], index: 2, kind: input, shape index: {}]
  %s3 = inlined_call_operand.vmem [shape: f32[1,32], index: 3, kind: input, shape index: {}]
  %s4 = inlined_call_operand.hbm [shape: f32[16,32], index: 4, kind: output, shape index: {}]
  %s5 = sld [smem:[#allocation0]]
  $region57: #{tpu_custom_call.1} parent=0
    _
  %s7 = ssub.s32 1, %s5
  %s8 = scalar_select 0, %s7, %s5
  $region1: #{tpu_custom_call.1} parent=0
    #allocation3 [shape = 'u8[8192]{0}', space=vmem, size = 0x2000, scoped, tag = 'output window, operand 0']
    #allocation4 [shape = 's32[2]{0}', space=sflag, size = 0x8, scoped, tag = 'scoped memory for tpu_custom_call.1']
    %9 = vsyncpa [#allocation4], 0
    %s10 = scalar_lea.sflag [#allocation4], 1
    %11 = vsyncpa %s10, 0
    loop: start=0, step=1, limit=4
    $region2: #{tpu_custom_call.1} parent=1 // loop_pre_header
      _
    $region3: #{tpu_custom_call.1} parent=1 // loop_header
      %s13 = sphi 0, %s17
      %p14 = scmp.ge.s32.totalorder %s13, 4
      %s20 = sphi 0, %s32
      %s21 = sphi 0, %s28
      %s22 = sphi 0, %s20
      %s23 = sphi 0, %s21
      %s24 = sphi 0, %s22
      %s25 = sphi 0, %s23
      %s35 = sphi 0, %s37
      %s38 = sphi 0, %s35
      %s39 = sphi 0, %s38
      %s55 = sphi 0, %s39
      %s61 = sphi 0, %s63
      %s64 = sphi 0, %s61
      %s65 = sphi 0, %s64
      %s81 = sphi 0, %s65
      %s87 = sphi 0, %s89
      %s90 = sphi 0, %s87
      %s91 = sphi 0, %s90
      %s107 = sphi 0, %s91
      %s111 = sphi 0, %s111
      %s113 = sphi 0, %s111
      %s114 = sphi 0, %s113
      %s128 = sphi 0, %s114
      %s134 = sphi 0, %s136
      %s137 = sphi 0, %s134
      %s138 = sphi 0, %s137
      %s154 = sphi 0, %s138
    $region4: #{tpu_custom_call.1} parent=1 // loop_header_branch
      %16 = sbr.rel (%p14) target = $region8
    $region5: #{tpu_custom_call.1} parent=1 // loop_body
      %s18 = ssub.s32 %s13, 1
      %s19 = ssub.s32 %s13, 2
      %s26 = sadd.s32 1, %s21
      %p27 = scmp.ge.s32.totalorder %s26, 1
      %s28 = scalar_select %p27, 0, %s26
      %s29 = sadd.s32 1, %s20
      %s30 = scalar_select %p27, %s29, %s20
      %p31 = scmp.ge.s32.totalorder %s30, 2
      %s32 = scalar_select %p31, 0, %s30
      %s33 = ssub.s32 %s20, %s32
      %p34 = scmp.eq.s32.totalorder %s33, 0
      %s36 = sadd.s32 %s35, 1
      %s37 = scalar_select %p34, %s35, %s36
      %p40 = pneg %p34
      %p41 = scmp.eq.s32.totalorder %s13, 1
      %p42 = por %p40, %p41
      %p43 = scmp.ne.s32.totalorder %s35, %s38
      %p44 = scmp.eq.s32.totalorder %s13, 0
      %p45 = por %p43, %p44
      %p46 = scmp.ne.s32.totalorder %s35, %s38
      %p47 = scmp.eq.s32.totalorder %s18, 1
      %p48 = por %p46, %p47
      %p49 = scmp.ne.s32.totalorder %s38, %s39
      %p50 = scmp.eq.s32.totalorder %s18, 0
      %p51 = por %p49, %p50
      %p52 = scmp.ne.s32.totalorder %s38, %s39
      %p53 = scmp.eq.s32.totalorder %s19, 1
      %p54 = por %p52, %p53
      %p56 = scmp.ne.s32.totalorder %s39, %s55
      %p57 = scmp.eq.s32.totalorder %s19, 0
      %p58 = por %p56, %p57
      %s59 = ssub.s32 %s21, %s28
      %p60 = scmp.eq.s32.totalorder %s59, 0
      %s62 = sadd.s32 %s61, 1
      %s63 = scalar_select %p60, %s61, %s62
      %p66 = pneg %p60
      %p67 = scmp.eq.s32.totalorder %s13, 1
      %p68 = por %p66, %p67
      %p69 = scmp.ne.s32.totalorder %s61, %s64
      %p70 = scmp.eq.s32.totalorder %s13, 0
      %p71 = por %p69, %p70
      %p72 = scmp.ne.s32.totalorder %s61, %s64
      %p73 = scmp.eq.s32.totalorder %s18, 1
      %p74 = por %p72, %p73
      %p75 = scmp.ne.s32.totalorder %s64, %s65
      %p76 = scmp.eq.s32.totalorder %s18, 0
      %p77 = por %p75, %p76
      %p78 = scmp.ne.s32.totalorder %s64, %s65
      %p79 = scmp.eq.s32.totalorder %s19, 1
      %p80 = por %p78, %p79
      %p82 = scmp.ne.s32.totalorder %s65, %s81
      %p83 = scmp.eq.s32.totalorder %s19, 0
      %p84 = por %p82, %p83
      %s85 = ssub.s32 %s21, %s28
      %p86 = scmp.eq.s32.totalorder %s85, 0
      %s88 = sadd.s32 %s87, 1
      %s89 = scalar_select %p86, %s87, %s88
      %p92 = pneg %p86
      %p93 = scmp.eq.s32.totalorder %s13, 1
      %p94 = por %p92, %p93
      %p95 = scmp.ne.s32.totalorder %s87, %s90
      %p96 = scmp.eq.s32.totalorder %s13, 0
      %p97 = por %p95, %p96
      %p98 = scmp.ne.s32.totalorder %s87, %s90
      %p99 = scmp.eq.s32.totalorder %s18, 1
      %p100 = por %p98, %p99
      %p101 = scmp.ne.s32.totalorder %s90, %s91
      %p102 = scmp.eq.s32.totalorder %s18, 0
      %p103 = por %p101, %p102
      %p104 = scmp.ne.s32.totalorder %s90, %s91
      %p105 = scmp.eq.s32.totalorder %s19, 1
      %p106 = por %p104, %p105
      %p108 = scmp.ne.s32.totalorder %s91, %s107
      %p109 = scmp.eq.s32.totalorder %s19, 0
      %p110 = por %p108, %p109
      %s112 = sadd.s32 %s111, 1
      %p115 = scmp.eq.s32.totalorder %s13, 1
      %p116 = scmp.ne.s32.totalorder %s111, %s113
      %p117 = scmp.eq.s32.totalorder %s13, 0
      %p118 = por %p116, %p117
      %p119 = scmp.ne.s32.totalorder %s111, %s113
      %p120 = scmp.eq.s32.totalorder %s18, 1
      %p121 = por %p119, %p120
      %p122 = scmp.ne.s32.totalorder %s113, %s114
      %p123 = scmp.eq.s32.totalorder %s18, 0
      %p124 = por %p122, %p123
      %p125 = scmp.ne.s32.totalorder %s113, %s114
      %p126 = scmp.eq.s32.totalorder %s19, 1
      %p127 = por %p125, %p126
      %p129 = scmp.ne.s32.totalorder %s114, %s128
      %p130 = scmp.eq.s32.totalorder %s19, 0
      %p131 = por %p129, %p130
      %s132 = ssub.s32 %s20, %s32
      %p133 = scmp.eq.s32.totalorder %s132, 0
      %s135 = sadd.s32 %s134, 1
      %s136 = scalar_select %p133, %s134, %s135
      %p139 = pneg %p133
      %p140 = scmp.eq.s32.totalorder %s13, 1
      %p141 = por %p139, %p140
      %p142 = scmp.ne.s32.totalorder %s134, %s137
      %p143 = scmp.eq.s32.totalorder %s13, 0
      %p144 = por %p142, %p143
      %p145 = scmp.ne.s32.totalorder %s134, %s137
      %p146 = scmp.eq.s32.totalorder %s18, 1
      %p147 = por %p145, %p146
      %p148 = scmp.ne.s32.totalorder %s137, %s138
      %p149 = scmp.eq.s32.totalorder %s18, 0
      %p150 = por %p148, %p149
      %p151 = scmp.ne.s32.totalorder %s137, %s138
      %p152 = scmp.eq.s32.totalorder %s19, 1
      %p153 = por %p151, %p152
      %p155 = scmp.ne.s32.totalorder %s138, %s154
      %p156 = scmp.eq.s32.totalorder %s19, 0
      %p157 = por %p155, %p156
      %p158 = scmp.le.s32.totalorder 1, %s13
      %p159 = scmp.lt.s32.totalorder %s13, 3
      %p160 = pnand %p158, %p159
      %p161 = pneg %p160
      // Predicated region
      $region9: #{tpu_custom_call.1} parent=5 // pred_check
        _
      $region10: #{tpu_custom_call.1} parent=5 // pred_check_branch
        %163 = sbr.rel (%p160) target = $region12
      $region11: #{tpu_custom_call.1} parent=5 // pred_region
        %s164 = ssub.s32 %s13, 1
        // Predicated region
        $region13: #{tpu_custom_call.1} parent=11 // pred_check
          %p165 = pneg %p77
        $region14: #{tpu_custom_call.1} parent=11 // pred_check_branch
          %167 = sbr.rel (%p165) target = $region16
        $region15: #{tpu_custom_call.1} parent=11 // pred_region
          %p168 = scmp.lt.s32.totalorder %s23, 0
          %s169 = scalar_select %p168, %s23, 0
          %s170 = smul.addr %s169, 8
          %s171 = scalar_lea.vmem %s1, %s170
        $region16: #{tpu_custom_call.1} parent=11 // pred_fallthru
          _
        // Predicated region
        $region17: #{tpu_custom_call.1} parent=11 // pred_check
          %p172 = pneg %p103
        $region18: #{tpu_custom_call.1} parent=11 // pred_check_branch
          %174 = sbr.rel (%p172) target = $region20
        $region19: #{tpu_custom_call.1} parent=11 // pred_region
          %s175 = smul.u32 16, %s23
          %p176 = scmp.lt.s32.totalorder %s175, 15
          %s177 = scalar_select %p176, %s175, 15
          %s178 = smul.addr %s177, 8
          %s179 = scalar_lea.vmem %s2, %s178
          %s180 = smul.u32 16, %s23
        $region20: #{tpu_custom_call.1} parent=11 // pred_fallthru
          _
        // Predicated region
        $region21: #{tpu_custom_call.1} parent=11 // pred_check
          %p181 = pneg %p124
        $region22: #{tpu_custom_call.1} parent=11 // pred_check_branch
          %183 = sbr.rel (%p181) target = $region24
        $region23: #{tpu_custom_call.1} parent=11 // pred_region
          _
        $region24: #{tpu_custom_call.1} parent=11 // pred_fallthru
          _
      $region12: #{tpu_custom_call.1} parent=5 // pred_fallthru
        _
      %p184 = scmp.lt.s32.totalorder %s13, 2
      // Predicated region
      $region25: #{tpu_custom_call.1} parent=5 // pred_check
        %p185 = pneg %p184
      $region26: #{tpu_custom_call.1} parent=5 // pred_check_branch
        %187 = sbr.rel (%p185) target = $region28
      $region27: #{tpu_custom_call.1} parent=5 // pred_region
        // Predicated region
        $region29: #{tpu_custom_call.1} parent=27 // pred_check
          %p188 = pneg %p45
        $region30: #{tpu_custom_call.1} parent=27 // pred_check_branch
          %190 = sbr.rel (%p188) target = $region32
        $region31: #{tpu_custom_call.1} parent=27 // pred_region
          %p191 = scmp.lt.s32.totalorder %s20, 1
          %s192 = scalar_select %p191, %s20, 1
          %s193 = smul.addr %s192, 8
          %s194 = scalar_lea.vmem %s0, %s193
        $region32: #{tpu_custom_call.1} parent=27 // pred_fallthru
          _
      $region28: #{tpu_custom_call.1} parent=5 // pred_fallthru
        _
      %p195 = scmp.le.s32.totalorder 1, %s13
      %p196 = scmp.lt.s32.totalorder %s13, 3
      %p197 = pnand %p195, %p196
      %p198 = pneg %p197
      // Predicated region
      $region33: #{tpu_custom_call.1} parent=5 // pred_check
        _
      $region34: #{tpu_custom_call.1} parent=5 // pred_check_branch
        %200 = sbr.rel (%p197) target = $region36
      $region35: #{tpu_custom_call.1} parent=5 // pred_region
        %s201 = ssub.s32 %s13, 1
        %p202 = scmp.lt.s32.totalorder %s22, 1
        %s203 = scalar_select %p202, %s22, 1
        %s204 = smul.addr %s203, 8
        %s205 = scalar_lea.vmem %s0, %s204
        %p206 = pneg %p51
        %p207 = pneg %p48
        %p208 = scmp.lt.s32.totalorder %s23, 0
        %s209 = scalar_select %p208, %s23, 0
        %s210 = smul.addr %s209, 8
        %s211 = scalar_lea.vmem %s1, %s210
        %p212 = pneg %p77
        %p213 = pneg %p74
        %s214 = smul.u32 16, %s23
        %p215 = scmp.lt.s32.totalorder %s214, 15
        %s216 = scalar_select %p215, %s214, 15
        %s217 = smul.addr %s216, 8
        %s218 = scalar_lea.vmem %s2, %s217
        %p219 = pneg %p103
        %p220 = pneg %p100
        %p221 = pneg %p124
        %p222 = pneg %p121
        %p223 = pneg %p150
        %p224 = pneg %p147
        %s225 = sand.u32 %s137, 1
        %s226 = scalar_lea.sflag [#allocation4], %s225
        %s227 = sand.u32 %s137, 1
        %s228 = smul.addr %s227, 8
        %s229 = scalar_lea.vmem [#allocation3], %s228
        %p230 = scmp.lt.s32.totalorder %s22, 1
        %s231 = scalar_select %p230, %s22, 1
        %s232 = smul.addr %s231, 8
        %s233 = scalar_lea.vmem %s0, %s232
        %p234 = scmp.lt.s32.totalorder %s23, 0
        %s235 = scalar_select %p234, %s23, 0
        %s236 = smul.addr %s235, 8
        %s237 = scalar_lea.vmem %s1, %s236
        %s238 = smul.u32 16, %s23
        %p239 = scmp.lt.s32.totalorder %s238, 15
        %s240 = scalar_select %p239, %s238, 15
        %s241 = smul.addr %s240, 8
        %s242 = scalar_lea.vmem %s2, %s241
        %s243 = smul.u32 16, %s23
        %p244 = scmp.eq.s32.totalorder %s23, 0
        // Predicated region
        $region37: #{tpu_custom_call.1} parent=35 // pred_check
          %p245 = pneg %p244
        $region38: #{tpu_custom_call.1} parent=35 // pred_check_branch
          %247 = sbr.rel (%p245) target = $region40
        $region39: #{tpu_custom_call.1} parent=35 // pred_region
          %vm248 = vcmask 261120
          %249 = vst.msk [vmem:[#allocation2] sm:$0xff] %vm248, 0.0
        $region40: #{tpu_custom_call.1} parent=35 // pred_fallthru
          _
        %v250 = vld [vmem:[%s233] sm:$0xff]
        %v251 = vld [vmem:[%s237] sm:$0xff]
        %v252 = vld [vmem:[%s237 + $0x8] sm:$0xff]
        %v253 = vld [vmem:[%s237 + $0x10] sm:$0xff]
        %v254 = vld [vmem:[%s237 + $0x18] sm:$0xff]
        %vm255 = vcmask 261120
        %v257 = vsel %vm255, %v250, 0
        %259 = vmatpush.msra.mxu0 0.0
        %260 = vmatpush.msra.mxu0 0.0
        %261 = vmatpush.msra.mxu0 0.0
        %262 = vmatpush.msra.mxu0 0.0
        %263 = vmatpush.msra.mxu0 0.0
        %264 = vmatpush.msra.mxu0 0.0
        %265 = vmatpush.msra.mxu0 0.0
        %266 = vmatpush.msra.mxu0 0.0
        %267 = vmatpush.msra.mxu0 0.0
        %268 = vmatpush.msra.mxu0 0.0
        %269 = vmatpush.msra.mxu0 0.0
        %270 = vmatpush.msra.mxu0 0.0
        %271 = vmatpush.msra.mxu0 %v254
        %272 = vmatpush.msra.mxu0 %v253
        %273 = vmatpush.msra.mxu0 %v252
        %274 = vmatpush.msra.mxu0 %v251
        %275 = vmatmul.f32.gmra.mxu0 %v257
        %v276 = vpop.f32.mrf.mxu0
        %v277 = vadd.f32 0.0, %v276
        %278 = vdwg.mxu0
        %v279 = vmax.f32 %v277, 0.0
        %v280 = vmul.f32 %v279, %v279
        %v281 = vld [vmem:[#allocation2] sm:$0xff]
        %v282 = vld [vmem:[%s242] sm:$0xff]
        %v283 = vld [vmem:[%s242 + $0x8] sm:$0xff]
        %v284 = vld [vmem:[%s242 + $0x10] sm:$0xff]
        %v285 = vld [vmem:[%s242 + $0x18] sm:$0xff]
        %v286 = vld [vmem:[%s242 + $0x20] sm:$0xff]
        %v287 = vld [vmem:[%s242 + $0x28] sm:$0xff]
        %v288 = vld [vmem:[%s242 + $0x30] sm:$0xff]
        %v289 = vld [vmem:[%s242 + $0x38] sm:$0xff]
        %v290 = vld [vmem:[%s242 + $0x40] sm:$0xff]
        %v291 = vld [vmem:[%s242 + $0x48] sm:$0xff]
        %v292 = vld [vmem:[%s242 + $0x50] sm:$0xff]
        %v293 = vld [vmem:[%s242 + $0x58] sm:$0xff]
        %v294 = vld [vmem:[%s242 + $0x60] sm:$0xff]
        %v295 = vld [vmem:[%s242 + $0x68] sm:$0xff]
        %v296 = vld [vmem:[%s242 + $0x70] sm:$0xff]
        %v297 = vld [vmem:[%s242 + $0x78] sm:$0xff]
        %298 = vmatpush.msra.mxu0 %v297
        %299 = vmatpush.msra.mxu0 %v296
        %300 = vmatpush.msra.mxu0 %v295
        %301 = vmatpush.msra.mxu0 %v294
        %302 = vmatpush.msra.mxu0 %v293
        %303 = vmatpush.msra.mxu0 %v292
        %304 = vmatpush.msra.mxu0 %v291
        %305 = vmatpush.msra.mxu0 %v290
        %306 = vmatpush.msra.mxu0 %v289
        %307 = vmatpush.msra.mxu0 %v288
        %308 = vmatpush.msra.mxu0 %v287
        %309 = vmatpush.msra.mxu0 %v286
        %310 = vmatpush.msra.mxu0 %v285
        %311 = vmatpush.msra.mxu0 %v284
        %312 = vmatpush.msra.mxu0 %v283
        %313 = vmatpush.msra.mxu0 %v282
        %314 = vmatmul.f32.gmra.mxu0 %v280
        %v315 = vpop.f32.mrf.mxu0
        %v316 = vadd.f32 0.0, %v315
        %317 = vdwg.mxu0
        %v318 = vadd.f32 %v281, %v316
        %319 = vst.msk [vmem:[#allocation2] sm:$0xff] %vm255, %v318
        // Predicated region
        $region41: #{tpu_custom_call.1} parent=35 // pred_check
          %p320 = pneg %p244
        $region42: #{tpu_custom_call.1} parent=35 // pred_check_branch
          %322 = sbr.rel (%p320) target = $region44
        $region43: #{tpu_custom_call.1} parent=35 // pred_region
          %v323 = vld [vmem:[#allocation2] sm:$0xff]
          %v324 = vld [vmem:[%s3] sm:$0x1]
          %v326 = vperm.slane %v324, 0
          %v328 = vadd.f32 %v323, %v326
          %329 = vst.msk [vmem:[%s229] sm:$0xff] %vm255, %v328
        $region44: #{tpu_custom_call.1} parent=35 // pred_fallthru
          _
        %s330 = sand.u32 %s137, 1
        %s331 = scalar_lea.sflag [#allocation4], %s330
        %s332 = sand.u32 %s137, 1
        %s333 = smul.addr %s332, 8
        %s334 = scalar_lea.vmem [#allocation3], %s333
        // Predicated region
        $region45: #{tpu_custom_call.1} parent=35 // pred_check
          %p335 = pneg %p147
        $region46: #{tpu_custom_call.1} parent=35 // pred_check_branch
          %337 = sbr.rel (%p335) target = $region48
        $region47: #{tpu_custom_call.1} parent=35 // pred_region
          %339 = vsyncadd %s331, 0
          %s340 = smul.addr %s22, 8
          %s341 = scalar_lea.hbm %s4, %s340
          %s343 = sshll.u32 %s334, 4
          %s344 = int_to_ptr.vmem [resolvable:$true] %s343
          %s345 = sshll.u32 %s341, 4
          %s346 = int_to_ptr.hbm [resolvable:$true] %s345
          %348 = dma.vmem_to_hbm [thread:$0]  %s344, 128, %s346, %s331
        $region48: #{tpu_custom_call.1} parent=35 // pred_fallthru
          _
      $region36: #{tpu_custom_call.1} parent=5 // pred_fallthru
        _
      %p349 = scmp.le.s32.totalorder 2, %s13
      // Predicated region
      $region49: #{tpu_custom_call.1} parent=5 // pred_check
        %p350 = pneg %p349
      $region50: #{tpu_custom_call.1} parent=5 // pred_check_branch
        %352 = sbr.rel (%p350) target = $region52
      $region51: #{tpu_custom_call.1} parent=5 // pred_region
        %s353 = ssub.s32 %s13, 2
        // Predicated region
        $region53: #{tpu_custom_call.1} parent=51 // pred_check
          %p354 = pneg %p153
        $region54: #{tpu_custom_call.1} parent=51 // pred_check_branch
          %356 = sbr.rel (%p354) target = $region56
        $region55: #{tpu_custom_call.1} parent=51 // pred_region
          %s357 = sand.u32 %s138, 1
          %s358 = scalar_lea.sflag [#allocation4], %s357
          %s359 = sand.u32 %s138, 1
          %s360 = smul.addr %s359, 8
          %s361 = scalar_lea.vmem [#allocation3], %s360
          %363 = dma.done %s358, 128
        $region56: #{tpu_custom_call.1} parent=51 // pred_fallthru
          _
      $region52: #{tpu_custom_call.1} parent=5 // pred_fallthru
        _
    $region6: #{tpu_custom_call.1} parent=1 // loop_footer
      %s17 = sadd.s32 1, %s13
    $region7: #{tpu_custom_call.1} parent=1 // loop_footer_branch
      %12 = sbr.rel target = $region3
    $region8: #{tpu_custom_call.1} parent=1 // loop_exit
      _
    %364 = vsyncpa [#allocation4], 1
    %s365 = scalar_lea.sflag [#allocation4], 1
    %366 = vsyncpa %s365, 1

</llo_original>
